<compile_context>
chip_gen: v5e
topology: v5e:2x2
jax: 0.10.0
libtpu: 0.0.40
codegen_flags: <defaults>
</compile_context>

<pallas_src>
import functools

import jax
import jax.numpy as jnp
from jax.experimental import pallas as pl
from jax.experimental.pallas import tpu as pltpu

DIM_FROM = 3
DIM_TO = 2


def _round_up(n, m):
    return ((n + m - 1) // m) * m


def _mix32(x):
    """32-bit integer finalizer (murmur3 / lowbias32 style). Pure VPU int ops."""
    x = x ^ (x >> 16)
    x = x * jnp.uint32(0x7FEB352D)
    x = x ^ (x >> 15)
    x = x * jnp.uint32(0x846CA68B)
    x = x ^ (x >> 16)
    return x


def _linear1_dropout_kernel(seed_ref, w_ref, b_ref, xt_ref, ot_ref, *, rate, tile_b):
    # seed_ref: SMEM (1,) i32 ; w_ref: SMEM (DIM_TO, DIM_FROM) f32 ; b_ref: SMEM (DIM_TO,) f32
    # xt_ref:  VMEM (DIM_FROM, tile_b) ; ot_ref: VMEM (DIM_TO, tile_b)
    xt = xt_ref[...].astype(jnp.float32)            # lane-dense: batch on lanes

    if rate >= 1.0:
        xt = jnp.zeros_like(xt)
    elif rate > 0.0:
        # Counter-based hash dropout: keep iff hash(global_idx, seed) >= rate * 2^32.
        # Bits are generated directly in the lane-dense [DIM_FROM, tile_b] layout.
        i = pl.program_id(0)
        col = jax.lax.broadcasted_iota(jnp.int32, xt.shape, 1) + i * tile_b
        row = jax.lax.broadcasted_iota(jnp.int32, xt.shape, 0)
        idx = (col * DIM_FROM + row).astype(jnp.uint32)
        seed_u = seed_ref[0].astype(jnp.uint32) * jnp.uint32(0x9E3779B9)
        bits = _mix32(idx ^ seed_u)
        thr = jnp.uint32(min(int(rate * 4294967296.0), 0xFFFFFFFF))
        # The 1/(1-rate) rescale is pre-folded into w_ref by the wrapper, so the
        # mask is a single compare + select, no extra per-element multiply.
        xt = jnp.where(bits >= thr, xt, jnp.float32(0.0))

    # 3x2 GEMM as scalar-broadcast FMAs on the VPU, bias folded into the epilogue.
    # Weights/bias come from SMEM (idle scalar slot); everything stays lane-dense.
    rows = []
    for j in range(DIM_TO):
        acc = w_ref[j, 0].astype(jnp.float32) * xt[0:1, :]
        for k in range(1, DIM_FROM):
            acc = acc + w_ref[j, k].astype(jnp.float32) * xt[k:k + 1, :]
        rows.append(acc + b_ref[j].astype(jnp.float32))
    ot_ref[...] = jnp.concatenate(rows, axis=0).astype(ot_ref.dtype)


def linear1_dropout(x, weight, bias, *, rate, seed=0, training=True, tile_b_max=2048):
    """Forward of Dropout(rate) -> Linear(DIM_FROM, DIM_TO).

    x: [B, DIM_FROM], weight: [DIM_TO, DIM_FROM], bias: [DIM_TO] -> [B, DIM_TO].
    Eval mode (training=False) makes dropout the identity.
    """
    B = x.shape[0]
    eff_rate = float(rate) if training else 0.0

    # Fold the inverted-dropout 1/(1-rate) rescale into the tiny weight matrix.
    if 0.0 < eff_rate < 1.0:
        w_eff = weight.astype(jnp.float32) / jnp.float32(1.0 - eff_rate)
    else:
        w_eff = weight.astype(jnp.float32)
    b = bias.astype(jnp.float32)
    seed_arr = jnp.array([seed], dtype=jnp.int32)

    # Lane-dense layout: put the batch on the 128-lane axis, pad to a lane multiple.
    xt = x.T                                               # [DIM_FROM, B]
    tile_b = min(int(tile_b_max), _round_up(B, 128))
    b_pad = _round_up(B, tile_b)
    if b_pad != B:
        xt = jnp.pad(xt, ((0, 0), (0, b_pad - B)))

    grid = (b_pad // tile_b,)
    kernel = functools.partial(_linear1_dropout_kernel, rate=eff_rate, tile_b=tile_b)

    ot = pl.pallas_call(
        kernel,
        out_shape=jax.ShapeDtypeStruct((DIM_TO, b_pad), x.dtype),
        grid=grid,
        in_specs=[
            pl.BlockSpec(memory_space=pltpu.MemorySpace.SMEM),       # seed (1,)
            pl.BlockSpec(memory_space=pltpu.MemorySpace.SMEM),       # W_eff (2, 3)
            pl.BlockSpec(memory_space=pltpu.MemorySpace.SMEM),       # bias (2,)
            pl.BlockSpec((DIM_FROM, tile_b), lambda i: (0, i)),      # x^T tile (lane-dense)
        ],
        out_specs=pl.BlockSpec((DIM_TO, tile_b), lambda i: (0, i)),  # o^T tile (lane-dense)
        compiler_params=pltpu.CompilerParams(
            dimension_semantics=("parallel",)),
    )(seed_arr, w_eff, b, xt)

    return ot[:, :B].T


if __name__ == "__main__":
    key = jax.random.PRNGKey(0)
    kx, kw, kb, kx2 = jax.random.split(key, 4)

    B = 8
    rate = 0.5

    # deterministic inputs / parameters (PyTorch-style Linear init bounds)
    x = jax.random.normal(kx, (B, DIM_FROM), dtype=jnp.float32)
    bound = 1.0 / (DIM_FROM ** 0.5)
    weight = jax.random.uniform(kw, (DIM_TO, DIM_FROM), jnp.float32, -bound, bound)
    bias = jax.random.uniform(kb, (DIM_TO,), jnp.float32, -bound, bound)

    ref = x @ weight.T + bias

    # eval mode: dropout is the identity -> must match the plain-JAX reference
    out_eval = jax.block_until_ready(
        linear1_dropout(x, weight, bias, rate=rate, training=False))
    assert out_eval.shape == (B, DIM_TO)
    assert jnp.allclose(out_eval, ref, atol=1e-5, rtol=1e-5), "eval-mode mismatch"

    # training mode with rate=0.0: also identity dropout
    out_p0 = jax.block_until_ready(
        linear1_dropout(x, weight, bias, rate=0.0, seed=7, training=True))
    assert jnp.allclose(out_p0, ref, atol=1e-5, rtol=1e-5), "rate=0 mismatch"

    # training mode with active dropout: shape / finiteness sanity
    out_train = jax.block_until_ready(
        linear1_dropout(x, weight, bias, rate=rate, seed=42, training=True))
    assert out_train.shape == (B, DIM_TO)
    assert bool(jnp.all(jnp.isfinite(out_train)))

    # multi-tile grid + batch-padding path (eval mode, exact reference check)
    B2 = 300
    x2 = jax.random.normal(kx2, (B2, DIM_FROM), dtype=jnp.float32)
    out2 = jax.block_until_ready(
        linear1_dropout(x2, weight, bias, rate=rate, training=False, tile_b_max=128))
    ref2 = x2 @ weight.T + bias
    assert out2.shape == (B2, DIM_TO)
    assert jnp.allclose(out2, ref2, atol=1e-5, rtol=1e-5), "multi-tile mismatch"

    print("KERNEL_OK")
</pallas_src>

<mosaic_0001>
module attributes {stable_mosaic.version = 11 : i64} {
  func.func @_linear1_dropout_kernel(%arg0: i32, %arg1: memref<1xi32, #tpu.memory_space<smem>>, %arg2: memref<2x3xf32, #tpu.memory_space<smem>>, %arg3: memref<2xf32, #tpu.memory_space<smem>>, %arg4: memref<3x128xf32, #tpu.memory_space<vmem>>, %arg5: memref<2x128xf32, #tpu.memory_space<vmem>>) attributes {dimension_semantics = [#tpu.dimension_semantics<parallel>], iteration_bounds = array<i64: 1>, scalar_prefetch = 0 : i64, scratch_operands = 0 : i64, tpu.core_type = #tpu.core_type<tc>, window_params = [{transform_indices = @transform_0, window_bounds = array<i64: 1>}, {transform_indices = @transform_1, window_bounds = array<i64: 2, 3>}, {transform_indices = @transform_2, window_bounds = array<i64: 2>}, {transform_indices = @transform_3, window_bounds = array<i64: 3, 128>}, {transform_indices = @transform_4, window_bounds = array<i64: 2, 128>}]} {
    %c0 = arith.constant 0 : index
    %c0_0 = arith.constant 0 : index
    %0 = vector.load %arg4[%c0, %c0_0] : memref<3x128xf32, #tpu.memory_space<vmem>>, vector<3x128xf32>
    %c0_1 = arith.constant 0 : index
    %c0_2 = arith.constant 0 : index
    %1 = memref.load %arg2[%c0_1, %c0_2] : memref<2x3xf32, #tpu.memory_space<smem>>
    %2 = vector.extract_strided_slice %0 {offsets = [0, 0], sizes = [1, 128], strides = [1, 1]} : vector<3x128xf32> to vector<1x128xf32>
    %3 = vector.broadcast %1 : f32 to vector<1x128xf32>
    %4 = arith.mulf %3, %2 : vector<1x128xf32>
    %c0_3 = arith.constant 0 : index
    %c1 = arith.constant 1 : index
    %5 = memref.load %arg2[%c0_3, %c1] : memref<2x3xf32, #tpu.memory_space<smem>>
    %6 = vector.extract_strided_slice %0 {offsets = [1, 0], sizes = [1, 128], strides = [1, 1]} : vector<3x128xf32> to vector<1x128xf32>
    %7 = vector.broadcast %5 : f32 to vector<1x128xf32>
    %8 = arith.mulf %7, %6 : vector<1x128xf32>
    %9 = arith.addf %4, %8 : vector<1x128xf32>
    %c0_4 = arith.constant 0 : index
    %c2 = arith.constant 2 : index
    %10 = memref.load %arg2[%c0_4, %c2] : memref<2x3xf32, #tpu.memory_space<smem>>
    %11 = vector.extract_strided_slice %0 {offsets = [2, 0], sizes = [1, 128], strides = [1, 1]} : vector<3x128xf32> to vector<1x128xf32>
    %12 = vector.broadcast %10 : f32 to vector<1x128xf32>
    %13 = arith.mulf %12, %11 : vector<1x128xf32>
    %14 = arith.addf %9, %13 : vector<1x128xf32>
    %c0_5 = arith.constant 0 : index
    %15 = memref.load %arg3[%c0_5] : memref<2xf32, #tpu.memory_space<smem>>
    %16 = vector.broadcast %15 : f32 to vector<1x128xf32>
    %17 = arith.addf %14, %16 : vector<1x128xf32>
    %c1_6 = arith.constant 1 : index
    %c0_7 = arith.constant 0 : index
    %18 = memref.load %arg2[%c1_6, %c0_7] : memref<2x3xf32, #tpu.memory_space<smem>>
    %19 = vector.extract_strided_slice %0 {offsets = [0, 0], sizes = [1, 128], strides = [1, 1]} : vector<3x128xf32> to vector<1x128xf32>
    %20 = vector.broadcast %18 : f32 to vector<1x128xf32>
    %21 = arith.mulf %20, %19 : vector<1x128xf32>
    %c1_8 = arith.constant 1 : index
    %c1_9 = arith.constant 1 : index
    %22 = memref.load %arg2[%c1_8, %c1_9] : memref<2x3xf32, #tpu.memory_space<smem>>
    %23 = vector.extract_strided_slice %0 {offsets = [1, 0], sizes = [1, 128], strides = [1, 1]} : vector<3x128xf32> to vector<1x128xf32>
    %24 = vector.broadcast %22 : f32 to vector<1x128xf32>
    %25 = arith.mulf %24, %23 : vector<1x128xf32>
    %26 = arith.addf %21, %25 : vector<1x128xf32>
    %c1_10 = arith.constant 1 : index
    %c2_11 = arith.constant 2 : index
    %27 = memref.load %arg2[%c1_10, %c2_11] : memref<2x3xf32, #tpu.memory_space<smem>>
    %28 = vector.extract_strided_slice %0 {offsets = [2, 0], sizes = [1, 128], strides = [1, 1]} : vector<3x128xf32> to vector<1x128xf32>
    %29 = vector.broadcast %27 : f32 to vector<1x128xf32>
    %30 = arith.mulf %29, %28 : vector<1x128xf32>
    %31 = arith.addf %26, %30 : vector<1x128xf32>
    %c1_12 = arith.constant 1 : index
    %32 = memref.load %arg3[%c1_12] : memref<2xf32, #tpu.memory_space<smem>>
    %33 = vector.broadcast %32 : f32 to vector<1x128xf32>
    %34 = arith.addf %31, %33 : vector<1x128xf32>
    %35 = tpu.concatenate %17, %34 in 0 : vector<1x128xf32>, vector<1x128xf32> -> vector<2x128xf32>
    %c0_13 = arith.constant 0 : index
    %c0_14 = arith.constant 0 : index
    %36 = vector.load %arg5[%c0_13, %c0_14] : memref<2x128xf32, #tpu.memory_space<vmem>>, vector<2x128xf32>
    tpu.vector_store %arg5[%c0_13, %c0_14], %35 {strides = array<i32>} : memref<2x128xf32, #tpu.memory_space<vmem>>, vector<2x128xf32>,
    return
  }
  func.func @transform_0(%arg0: i32) -> i32 {
    %c0_i32 = arith.constant 0 : i32
    %c0_i32_0 = arith.constant 0 : i32
    return %c0_i32 : i32
  }
  func.func @transform_1(%arg0: i32) -> (i32, i32) {
    %c0_i32 = arith.constant 0 : i32
    %c0_i32_0 = arith.constant 0 : i32
    %c0_i32_1 = arith.constant 0 : i32
    return %c0_i32, %c0_i32_0 : i32, i32
  }
  func.func @transform_2(%arg0: i32) -> i32 {
    %c0_i32 = arith.constant 0 : i32
    %c0_i32_0 = arith.constant 0 : i32
    return %c0_i32 : i32
  }
  func.func @transform_3(%arg0: i32) -> (i32, i32) {
    %c0_i32 = arith.constant 0 : i32
    %c0_i32_0 = arith.constant 0 : i32
    return %c0_i32, %arg0 : i32, i32
  }
  func.func @transform_4(%arg0: i32) -> (i32, i32) {
    %c0_i32 = arith.constant 0 : i32
    %c0_i32_0 = arith.constant 0 : i32
    return %c0_i32, %arg0 : i32, i32
  }
}

</mosaic_0001>

<llo_original>
// kernel: tpu_custom_call.1
$region0: #{tpu_custom_call.1}
  #allocation0 [shape = 'u32[]', space=smem, size = 0x4, offset = 0x4, fixed_abs, tag = 'smem constant byte address 0x4 - core index']
  #allocation1 [shape = 'u32[72,128]{1,0:T(1,128)}', space=vmem, size = 0x9000, scoped, tag = 'internal scratch']
  #allocation2 [shape = 's32[1]{0:T(128)S(6)}', space=smem, size = 0x200, scoped, tag = 'scoped memory for tpu_custom_call.1']
  %s0 = inlined_call_operand.<no memory space> [shape: s32[1], index: 0, kind: input, shape index: {}]
  %s1 = inlined_call_operand.vmem [shape: f32[2,3], index: 1, kind: input, shape index: {}]
  %s2 = inlined_call_operand.hbm [shape: f32[2], index: 2, kind: input, shape index: {}]
  %s3 = inlined_call_operand.hbm [shape: f32[3,128], index: 3, kind: input, shape index: {}]
  %s4 = inlined_call_operand.hbm [shape: f32[2,128], index: 4, kind: output, shape index: {}]
  %s5 = sld [smem:[#allocation0]]
  $region38: #{tpu_custom_call.1} parent=0
    _
  %s7 = ssub.s32 1, %s5
  %s8 = scalar_select 0, %s7, %s5
  %9 = sst [smem:[#allocation2]] %s0
  $region1: #{tpu_custom_call.1} parent=0
    #allocation3 [shape = 'u8[1024]{0}', space=smem, size = 0x400, scoped, tag = 'input window, operand 1, single buffered']
    #allocation4 [shape = 's32[1]{0}', space=sflag, size = 0x4, scoped, tag = 'scoped memory for tpu_custom_call.1']
    #allocation5 [shape = 's32[1]{0}', space=sflag, size = 0x4, scoped, tag = 'scoped memory for tpu_custom_call.1']
    #allocation6 [shape = 's32[1]{0}', space=sflag, size = 0x4, scoped, tag = 'scoped memory for tpu_custom_call.1']
    #allocation7 [shape = 's32[1]{0}', space=sflag, size = 0x4, scoped, tag = 'scoped memory for tpu_custom_call.1']
    #allocation8 [shape = 'u8[512]{0}', space=smem, size = 0x200, scoped, tag = 'input window, operand 2, single buffered']
    #allocation9 [shape = 'u8[2048]{0}', space=vmem, size = 0x800, scoped, tag = 'input window, operand 3, single buffered']
    #allocation10 [shape = 'u8[1024]{0}', space=vmem, size = 0x400, scoped, tag = 'output window, operand 0, single buffered']
    %10 = vsyncpa [#allocation7], 0
    %11 = vsyncpa [#allocation6], 0
    %12 = vsyncpa [#allocation4], 0
    %13 = vsyncpa [#allocation5], 0
    // Predicated region
    $region2: #{tpu_custom_call.1} parent=1 // pred_check
      _
    $region3: #{tpu_custom_call.1} parent=1 // pred_check_branch
      %15 = sbr.rel (0) target = $region5
    $region4: #{tpu_custom_call.1} parent=1 // pred_region
      _
    $region5: #{tpu_custom_call.1} parent=1 // pred_fallthru
      _
    // Predicated region
    $region6: #{tpu_custom_call.1} parent=1 // pred_check
      _
    $region7: #{tpu_custom_call.1} parent=1 // pred_check_branch
      %17 = sbr.rel (0) target = $region9
    $region8: #{tpu_custom_call.1} parent=1 // pred_region
      %19 = vsyncadd [#allocation7], 0
      %s21 = sshll.u32 %s1, 4
      %s22 = int_to_ptr.vmem [resolvable:$true] %s21
      %24 = dma.vmem_to_smem %s22, 32, [#allocation3], [#allocation7]
    $region9: #{tpu_custom_call.1} parent=1 // pred_fallthru
      _
    // Predicated region
    $region10: #{tpu_custom_call.1} parent=1 // pred_check
      _
    $region11: #{tpu_custom_call.1} parent=1 // pred_check_branch
      %26 = sbr.rel (0) target = $region13
    $region12: #{tpu_custom_call.1} parent=1 // pred_region
      %28 = vsyncadd [#allocation6], 0
      %s30 = sshll.u32 %s2, 4
      %s31 = int_to_ptr.hbm [resolvable:$true] %s30
      %33 = dma.hbm_to_smem %s31, 16, [#allocation8], [#allocation6]
    $region13: #{tpu_custom_call.1} parent=1 // pred_fallthru
      _
    // Predicated region
    $region14: #{tpu_custom_call.1} parent=1 // pred_check
      _
    $region15: #{tpu_custom_call.1} parent=1 // pred_check_branch
      %35 = sbr.rel (0) target = $region17
    $region16: #{tpu_custom_call.1} parent=1 // pred_region
      %37 = vsyncadd [#allocation4], 0
      %s39 = sshll.u32 %s3, 4
      %s40 = int_to_ptr.hbm [resolvable:$true] %s39
      %s41 = sshll.u32 [#allocation9], 4
      %s42 = int_to_ptr.vmem [resolvable:$true] %s41
      %44 = dma.hbm_to_vmem [thread:$0]  %s40, 64, %s42, [#allocation4]
    $region17: #{tpu_custom_call.1} parent=1 // pred_fallthru
      _
    // Predicated region
    $region18: #{tpu_custom_call.1} parent=1 // pred_check
      _
    $region19: #{tpu_custom_call.1} parent=1 // pred_check_branch
      %46 = sbr.rel (0) target = $region21
    $region20: #{tpu_custom_call.1} parent=1 // pred_region
      %48 = dma.done [#allocation7], 32
    $region21: #{tpu_custom_call.1} parent=1 // pred_fallthru
      _
    // Predicated region
    $region22: #{tpu_custom_call.1} parent=1 // pred_check
      _
    $region23: #{tpu_custom_call.1} parent=1 // pred_check_branch
      %50 = sbr.rel (0) target = $region25
    $region24: #{tpu_custom_call.1} parent=1 // pred_region
      %52 = dma.done [#allocation6], 16
    $region25: #{tpu_custom_call.1} parent=1 // pred_fallthru
      _
    // Predicated region
    $region26: #{tpu_custom_call.1} parent=1 // pred_check
      _
    $region27: #{tpu_custom_call.1} parent=1 // pred_check_branch
      %54 = sbr.rel (0) target = $region29
    $region28: #{tpu_custom_call.1} parent=1 // pred_region
      %56 = dma.done [#allocation4], 64
    $region29: #{tpu_custom_call.1} parent=1 // pred_fallthru
      _
    %57 = sfence
    %v58 = vld [vmem:[#allocation9] sm:$0x7]
    %s59 = sld [smem:[#allocation3]]
    %v60 = vstv %s59
    %v61 = vmul.f32 %v60, %v58
    %s62 = sld [smem:[#allocation3 + $0x1]]
    %v63 = vstv %s62
    %v64 = vmul.f32 %v63, %v58
    %v66 = vrot.slane %v64, 1
    %v68 = vadd.f32 %v61, %v66
    %s69 = sld [smem:[#allocation3 + $0x2]]
    %v70 = vstv %s69
    %v71 = vmul.f32 %v70, %v58
    %v73 = vrot.slane %v71, 2
    %v75 = vadd.f32 %v68, %v73
    %s76 = sld [smem:[#allocation8]]
    %v77 = vstv %s76
    %v78 = vadd.f32 %v75, %v77
    %s79 = sld [smem:[#allocation3 + $0x80]]
    %v80 = vstv %s79
    %v81 = vmul.f32 %v80, %v58
    %s82 = sld [smem:[#allocation3 + $0x81]]
    %v83 = vstv %s82
    %v84 = vmul.f32 %v83, %v58
    %v86 = vrot.slane %v84, 1
    %v88 = vadd.f32 %v81, %v86
    %s89 = sld [smem:[#allocation3 + $0x82]]
    %v90 = vstv %s89
    %v91 = vmul.f32 %v90, %v58
    %v93 = vrot.slane %v91, 2
    %v95 = vadd.f32 %v88, %v93
    %s96 = sld [smem:[#allocation8 + $0x1]]
    %v97 = vstv %s96
    %v98 = vadd.f32 %v95, %v97
    %v100 = vrot.slane %v98, 7
    %vm102 = vcmask 1040384
    %v103 = vsel %vm102, %v78, %v100
    %104 = vst [vmem:[#allocation10] sm:$0x3] %v103
    // Predicated region
    $region30: #{tpu_custom_call.1} parent=1 // pred_check
      _
    $region31: #{tpu_custom_call.1} parent=1 // pred_check_branch
      %106 = sbr.rel (0) target = $region33
    $region32: #{tpu_custom_call.1} parent=1 // pred_region
      %108 = vsyncadd [#allocation5], 0
      %s110 = sshll.u32 [#allocation10], 4
      %s111 = int_to_ptr.vmem [resolvable:$true] %s110
      %s112 = sshll.u32 %s4, 4
      %s113 = int_to_ptr.hbm [resolvable:$true] %s112
      %115 = dma.vmem_to_hbm [thread:$0]  %s111, 32, %s113, [#allocation5]
    $region33: #{tpu_custom_call.1} parent=1 // pred_fallthru
      _
    // Predicated region
    $region34: #{tpu_custom_call.1} parent=1 // pred_check
      _
    $region35: #{tpu_custom_call.1} parent=1 // pred_check_branch
      %117 = sbr.rel (0) target = $region37
    $region36: #{tpu_custom_call.1} parent=1 // pred_region
      %119 = dma.done [#allocation5], 32
    $region37: #{tpu_custom_call.1} parent=1 // pred_fallthru
      _
    %120 = vsyncpa [#allocation4], 1
    %121 = vsyncpa [#allocation5], 1
    %122 = vsyncpa [#allocation6], 1
    %123 = vsyncpa [#allocation7], 1

</llo_original>
